<compile_context>
chip_gen: v7x
topology: tpu7x:2x2x1
jax: 0.10.0
libtpu: 0.0.40
codegen_flags: <defaults>
</compile_context>

<pallas_src>
import functools

import jax
import jax.numpy as jnp
from jax.experimental import pallas as pl
from jax.experimental.pallas import tpu as pltpu


def _kendall4_kernel(params_ref, losses_ref, loss_sum_ref, means_ref, acc_ref,
                     *, inv_n):
    # params_ref : SMEM f32[4]  = [w0, w1, b0, b1]  (w_i = exp(-log_var_i), b_i = log_var_i)
    # losses_ref : VMEM f32[2, TH, W]  (stacked per-task loss tile)
    # loss_sum_ref : VMEM f32[TH, W]
    # means_ref  : SMEM f32[2]   (mean(tmp1), mean(tmp2))
    # acc_ref    : SMEM f32[2]   scratch: running sums of loss0 / loss1
    i = pl.program_id(0)

    w0 = params_ref[0]
    w1 = params_ref[1]
    b0 = params_ref[2]
    b1 = params_ref[3]

    l0 = losses_ref[0]
    l1 = losses_ref[1]

    # Fused elementwise pass: (w0*l0 + b0) + (w1*l1 + b1) without materializing tmp_i.
    loss_sum_ref[...] = w0 * l0 + w1 * l1 + (b0 + b1)

    @pl.when(i == 0)
    def _():
        acc_ref[0] = jnp.float32(0.0)
        acc_ref[1] = jnp.float32(0.0)

    acc_ref[0] += jnp.sum(l0)
    acc_ref[1] += jnp.sum(l1)

    @pl.when(i == pl.num_programs(0) - 1)
    def _():
        # mean(tmp_i) = w_i * mean(loss_i) + b_i
        means_ref[0] = w0 * (acc_ref[0] * inv_n) + b0
        means_ref[1] = w1 * (acc_ref[1] * inv_n) + b1


def kendall4_forward(log_vars, losses, *, block_rows=128):
    """log_vars: f32[2]; losses: f32[2, H, W] (stacked per-task loss maps).

    Returns (loss_sum f32[H, W], mean_tmp1 scalar, mean_tmp2 scalar).
    """
    n_tasks, H, W = losses.shape
    assert n_tasks == 2

    # Row-tile size: multiple of 8 (sublane) and a divisor of H, else one block.
    th = min(block_rows, H)
    if (H % th != 0) or (th != H and th % 8 != 0):
        th = H
    grid = (H // th,)

    # Hoist the scalar transcendentals out of the kernel.
    log_vars = log_vars.astype(jnp.float32)
    params = jnp.concatenate([jnp.exp(-log_vars), log_vars])  # [w0, w1, b0, b1]

    kernel = functools.partial(_kendall4_kernel, inv_n=1.0 / float(H * W))

    loss_sum, means = pl.pallas_call(
        kernel,
        grid=grid,
        out_shape=(
            jax.ShapeDtypeStruct((H, W), jnp.float32),
            jax.ShapeDtypeStruct((2,), jnp.float32),
        ),
        in_specs=[
            pl.BlockSpec(memory_space=pltpu.SMEM),                 # params (scalars)
            pl.BlockSpec((n_tasks, th, W), lambda i: (0, i, 0)),   # stacked losses
        ],
        out_specs=(
            pl.BlockSpec((th, W), lambda i: (i, 0)),               # loss_sum tiles
            pl.BlockSpec(memory_space=pltpu.SMEM),                 # packed scalar means
        ),
        scratch_shapes=[pltpu.SMEM((2,), jnp.float32)],            # running sums
        compiler_params=pltpu.CompilerParams(
            dimension_semantics=("arbitrary",)),                   # grid axis is a reduction
    )(params, losses)

    return loss_sum, means[0], means[1]


def _reference(log_vars, loss0, loss1):
    # Pure-JAX reference matching the PyTorch forward exactly.
    tmp1 = jnp.exp(-log_vars[0]) * loss0 + log_vars[0]
    tmp2 = jnp.exp(-log_vars[1]) * loss1 + log_vars[1]
    return tmp1 + tmp2, jnp.mean(tmp1), jnp.mean(tmp2)


if __name__ == "__main__":
    key = jax.random.PRNGKey(0)
    k_lv, k_l0, k_l1 = jax.random.split(key, 3)

    # torch.nn.init.uniform_(log_vars, 0.2, 1): two scalar log-variance params.
    log_vars = jax.random.uniform(k_lv, (2,), dtype=jnp.float32,
                                  minval=0.2, maxval=1.0)

    # Small per-task loss maps; H=256 exercises the tiled (grid=2) accumulator path.
    H, W = 256, 128
    loss0 = jax.random.uniform(k_l0, (H, W), dtype=jnp.float32)
    loss1 = jax.random.uniform(k_l1, (H, W), dtype=jnp.float32)
    losses = jnp.stack([loss0, loss1])  # (2, H, W): one stacked input -> one DMA stream

    loss_sum, mean1, mean2 = kendall4_forward(log_vars, losses)
    jax.block_until_ready((loss_sum, mean1, mean2))

    ref_sum, ref_m1, ref_m2 = _reference(log_vars, loss0, loss1)
    assert jnp.allclose(loss_sum, ref_sum, rtol=1e-5, atol=1e-5)
    assert jnp.allclose(mean1, ref_m1, rtol=1e-5, atol=1e-5)
    assert jnp.allclose(mean2, ref_m2, rtol=1e-5, atol=1e-5)

    print("KERNEL_OK")
</pallas_src>

<mosaic_0001>
module attributes {stable_mosaic.version = 11 : i64} {
  func.func @_kendall4_kernel(%arg0: i32, %arg1: memref<4xf32, #tpu.memory_space<smem>>, %arg2: memref<2x128x128xf32, #tpu.memory_space<vmem>>, %arg3: memref<128x128xf32, #tpu.memory_space<vmem>>, %arg4: memref<2xf32, #tpu.memory_space<smem>>, %arg5: memref<2xf32, #tpu.memory_space<smem>>) attributes {dimension_semantics = [#tpu.dimension_semantics<arbitrary>], iteration_bounds = array<i64: 2>, scalar_prefetch = 0 : i64, scratch_operands = 1 : i64, tpu.core_type = #tpu.core_type<tc>, window_params = [{transform_indices = @transform_0, window_bounds = array<i64: 4>}, {transform_indices = @transform_1, window_bounds = array<i64: 2, 128, 128>}, {transform_indices = @transform_2, window_bounds = array<i64: 128, 128>}, {transform_indices = @transform_3, window_bounds = array<i64: 2>}]} {
    %c0 = arith.constant 0 : index
    %0 = memref.load %arg1[%c0] : memref<4xf32, #tpu.memory_space<smem>>
    %c1 = arith.constant 1 : index
    %1 = memref.load %arg1[%c1] : memref<4xf32, #tpu.memory_space<smem>>
    %c2 = arith.constant 2 : index
    %2 = memref.load %arg1[%c2] : memref<4xf32, #tpu.memory_space<smem>>
    %c3 = arith.constant 3 : index
    %3 = memref.load %arg1[%c3] : memref<4xf32, #tpu.memory_space<smem>>
    %c0_0 = arith.constant 0 : index
    %c0_1 = arith.constant 0 : index
    %c0_2 = arith.constant 0 : index
    %4 = vector.load %arg2[%c0_0, %c0_1, %c0_2] : memref<2x128x128xf32, #tpu.memory_space<vmem>>, vector<1x128x128xf32>
    %5 = vector.shape_cast %4 : vector<1x128x128xf32> to vector<128x128xf32>
    %c1_3 = arith.constant 1 : index
    %c0_4 = arith.constant 0 : index
    %c0_5 = arith.constant 0 : index
    %6 = vector.load %arg2[%c1_3, %c0_4, %c0_5] : memref<2x128x128xf32, #tpu.memory_space<vmem>>, vector<1x128x128xf32>
    %7 = vector.shape_cast %6 : vector<1x128x128xf32> to vector<128x128xf32>
    %8 = vector.broadcast %0 : f32 to vector<128x128xf32>
    %9 = arith.mulf %8, %5 : vector<128x128xf32>
    %10 = vector.broadcast %1 : f32 to vector<128x128xf32>
    %11 = arith.mulf %10, %7 : vector<128x128xf32>
    %12 = arith.addf %9, %11 : vector<128x128xf32>
    %13 = arith.addf %2, %3 : f32
    %14 = vector.broadcast %13 : f32 to vector<128x128xf32>
    %15 = arith.addf %12, %14 : vector<128x128xf32>
    %c0_6 = arith.constant 0 : index
    %c0_7 = arith.constant 0 : index
    %16 = vector.load %arg3[%c0_6, %c0_7] : memref<128x128xf32, #tpu.memory_space<vmem>>, vector<128x128xf32>
    tpu.vector_store %arg3[%c0_6, %c0_7], %15 {strides = array<i32>} : memref<128x128xf32, #tpu.memory_space<vmem>>, vector<128x128xf32>,
    %c0_i32 = arith.constant 0 : i32
    %17 = arith.cmpi eq, %arg0, %c0_i32 : i32
    %18 = arith.extui %17 : i1 to i32
    %c0_i32_8 = arith.constant 0 : i32
    %19 = arith.cmpi ne, %18, %c0_i32_8 : i32
    scf.if %19 {
      %cst_15 = arith.constant 0.000000e+00 : f32
      %c0_16 = arith.constant 0 : index
      %37 = memref.load %arg5[%c0_16] : memref<2xf32, #tpu.memory_space<smem>>
      memref.store %cst_15, %arg5[%c0_16] : memref<2xf32, #tpu.memory_space<smem>>
      %cst_17 = arith.constant 0.000000e+00 : f32
      %c1_18 = arith.constant 1 : index
      %38 = memref.load %arg5[%c1_18] : memref<2xf32, #tpu.memory_space<smem>>
      memref.store %cst_17, %arg5[%c1_18] : memref<2xf32, #tpu.memory_space<smem>>
    } else {
    }
    %c0_9 = arith.constant 0 : index
    %20 = memref.load %arg5[%c0_9] : memref<2xf32, #tpu.memory_space<smem>>
    %21 = vector.shape_cast %5 : vector<128x128xf32> to vector<1x128x128xf32>
    %cst = arith.constant dense<0.000000e+00> : vector<1xf32>
    %22 = vector.multi_reduction <add>, %21, %cst [1, 2] : vector<1x128x128xf32> to vector<1xf32>
    %23 = vector.shape_cast %22 : vector<1xf32> to vector<1x1x1xf32>
    %24 = vector.extract %23[0, 0, 0] : f32 from vector<1x1x1xf32>
    %25 = arith.addf %20, %24 : f32
    %c0_10 = arith.constant 0 : index
    %26 = memref.load %arg5[%c0_10] : memref<2xf32, #tpu.memory_space<smem>>
    memref.store %25, %arg5[%c0_10] : memref<2xf32, #tpu.memory_space<smem>>
    %c1_11 = arith.constant 1 : index
    %27 = memref.load %arg5[%c1_11] : memref<2xf32, #tpu.memory_space<smem>>
    %28 = vector.shape_cast %7 : vector<128x128xf32> to vector<1x128x128xf32>
    %cst_12 = arith.constant dense<0.000000e+00> : vector<1xf32>
    %29 = vector.multi_reduction <add>, %28, %cst_12 [1, 2] : vector<1x128x128xf32> to vector<1xf32>
    %30 = vector.shape_cast %29 : vector<1xf32> to vector<1x1x1xf32>
    %31 = vector.extract %30[0, 0, 0] : f32 from vector<1x1x1xf32>
    %32 = arith.addf %27, %31 : f32
    %c1_13 = arith.constant 1 : index
    %33 = memref.load %arg5[%c1_13] : memref<2xf32, #tpu.memory_space<smem>>
    memref.store %32, %arg5[%c1_13] : memref<2xf32, #tpu.memory_space<smem>>
    %c1_i32 = arith.constant 1 : i32
    %34 = arith.cmpi eq, %arg0, %c1_i32 : i32
    %35 = arith.extui %34 : i1 to i32
    %c0_i32_14 = arith.constant 0 : i32
    %36 = arith.cmpi ne, %35, %c0_i32_14 : i32
    scf.if %36 {
      %c0_15 = arith.constant 0 : index
      %37 = memref.load %arg5[%c0_15] : memref<2xf32, #tpu.memory_space<smem>>
      %cst_16 = arith.constant 3.05175781E-5 : f32
      %38 = arith.mulf %37, %cst_16 : f32
      %39 = arith.mulf %0, %38 : f32
      %40 = arith.addf %39, %2 : f32
      %c0_17 = arith.constant 0 : index
      %41 = memref.load %arg4[%c0_17] : memref<2xf32, #tpu.memory_space<smem>>
      memref.store %40, %arg4[%c0_17] : memref<2xf32, #tpu.memory_space<smem>>
      %c1_18 = arith.constant 1 : index
      %42 = memref.load %arg5[%c1_18] : memref<2xf32, #tpu.memory_space<smem>>
      %cst_19 = arith.constant 3.05175781E-5 : f32
      %43 = arith.mulf %42, %cst_19 : f32
      %44 = arith.mulf %1, %43 : f32
      %45 = arith.addf %44, %3 : f32
      %c1_20 = arith.constant 1 : index
      %46 = memref.load %arg4[%c1_20] : memref<2xf32, #tpu.memory_space<smem>>
      memref.store %45, %arg4[%c1_20] : memref<2xf32, #tpu.memory_space<smem>>
    } else {
    }
    return
  }
  func.func @transform_0(%arg0: i32) -> i32 {
    %c0_i32 = arith.constant 0 : i32
    %c0_i32_0 = arith.constant 0 : i32
    return %c0_i32 : i32
  }
  func.func @transform_1(%arg0: i32) -> (i32, i32, i32) {
    %c0_i32 = arith.constant 0 : i32
    %c0_i32_0 = arith.constant 0 : i32
    %c0_i32_1 = arith.constant 0 : i32
    return %c0_i32, %arg0, %c0_i32_0 : i32, i32, i32
  }
  func.func @transform_2(%arg0: i32) -> (i32, i32) {
    %c0_i32 = arith.constant 0 : i32
    %c0_i32_0 = arith.constant 0 : i32
    return %arg0, %c0_i32 : i32, i32
  }
  func.func @transform_3(%arg0: i32) -> i32 {
    %c0_i32 = arith.constant 0 : i32
    %c0_i32_0 = arith.constant 0 : i32
    return %c0_i32 : i32
  }
}

</mosaic_0001>

<llo_original>
// kernel: tpu_custom_call.1
$region0: #{tpu_custom_call.1}
  #allocation0 [shape = 'u32[]', space=smem, size = 0x4, offset = 0x4, fixed_abs, tag = 'smem constant byte address 0x4 - core index']
  #allocation1 [shape = 'u32[144,128]{1,0:T(1,128)}', space=vmem, size = 0x12000, scoped, tag = 'internal scratch']
  #allocation2 [shape = 'f32[2]{0:T(128)}', space=smem, size = 0x200, scoped, tag = 'scratch operand']
  #allocation11 [shape = 's32[]', space=sflag, size = 0x4, offset = 0, fixed_abs, tag = 'sflag constant byte address 0x0 - dummy sync flag']
  %s0 = inlined_call_operand.hbm [shape: f32[4], index: 0, kind: input, shape index: {}]
  %s1 = inlined_call_operand.hbm [shape: f32[2,256,128], index: 1, kind: input, shape index: {}]
  %s2 = inlined_call_operand.hbm [shape: f32[256,128], index: 2, kind: output, shape index: {0}]
  %s3 = inlined_call_operand.hbm [shape: f32[2], index: 3, kind: output, shape index: {1}]
  %4 = xla_tuple %s2, %s3
  %s5 = sld [smem:[#allocation0]]
  $region65: #{tpu_custom_call.1} parent=0
    _
  %s7 = ssub.s32 1, %s5
  %s8 = scalar_select 0, %s7, %s5
  $region1: #{tpu_custom_call.1} parent=0
    #allocation3 [shape = 'u8[512]{0}', space=smem, size = 0x200, scoped, tag = 'input window, operand 0, single buffered']
    #allocation4 [shape = 's32[2]{0}', space=sflag, size = 0x8, scoped, tag = 'scoped memory for tpu_custom_call.1']
    #allocation5 [shape = 's32[2]{0}', space=sflag, size = 0x8, scoped, tag = 'scoped memory for tpu_custom_call.1']
    #allocation6 [shape = 's32[2]{0}', space=sflag, size = 0x8, scoped, tag = 'scoped memory for tpu_custom_call.1']
    #allocation7 [shape = 's32[2]{0}', space=sflag, size = 0x8, scoped, tag = 'scoped memory for tpu_custom_call.1']
    #allocation8 [shape = 'u8[262144]{0}', space=vmem, size = 0x40000, scoped, tag = 'input window, operand 1']
    #allocation9 [shape = 'u8[131072]{0}', space=vmem, size = 0x20000, scoped, tag = 'output window, operand 0']
    #allocation10 [shape = 'u8[512]{0}', space=smem, size = 0x200, scoped, tag = 'output window, operand 1, single buffered']
    %9 = vsyncpa [#allocation6], 0
    %10 = vsyncpa [#allocation4], 0
    %s11 = scalar_lea.sflag [#allocation4], 1
    %12 = vsyncpa %s11, 0
    %13 = vsyncpa [#allocation5], 0
    %s14 = scalar_lea.sflag [#allocation5], 1
    %15 = vsyncpa %s14, 0
    %16 = vsyncpa [#allocation7], 0
    loop: start=0, step=1, limit=4
    $region2: #{tpu_custom_call.1} parent=1 // loop_pre_header
      _
    $region3: #{tpu_custom_call.1} parent=1 // loop_header
      %s18 = sphi 0, %s22
      %p19 = scmp.ge.s32.totalorder %s18, 4
      %s26 = sphi 0, %s26
      %s28 = sphi 0, %s26
      %s29 = sphi 0, %s28
      %s43 = sphi 0, %s29
      %s49 = sphi 0, %s51
      %s52 = sphi 0, %s49
      %s53 = sphi 0, %s52
      %s69 = sphi 0, %s53
      %s75 = sphi 0, %s77
      %s78 = sphi 0, %s75
      %s79 = sphi 0, %s78
      %s95 = sphi 0, %s79
      %s99 = sphi 0, %s99
      %s101 = sphi 0, %s99
      %s102 = sphi 0, %s101
      %s116 = sphi 0, %s102
    $region4: #{tpu_custom_call.1} parent=1 // loop_header_branch
      %21 = sbr.rel (%p19) target = $region8
    $region5: #{tpu_custom_call.1} parent=1 // loop_body
      %s23 = ssub.s32 %s18, 1
      %s24 = ssub.s32 %s18, 2
      %s25 = sadd.s32 %s18, 1
      %s27 = sadd.s32 %s26, 1
      %p30 = scmp.eq.s32.totalorder %s18, 1
      %p31 = scmp.ne.s32.totalorder %s26, %s28
      %p32 = scmp.eq.s32.totalorder %s18, 0
      %p33 = por %p31, %p32
      %p34 = scmp.ne.s32.totalorder %s26, %s28
      %p35 = scmp.eq.s32.totalorder %s23, 1
      %p36 = por %p34, %p35
      %p37 = scmp.ne.s32.totalorder %s28, %s29
      %p38 = scmp.eq.s32.totalorder %s23, 0
      %p39 = por %p37, %p38
      %p40 = scmp.ne.s32.totalorder %s28, %s29
      %p41 = scmp.eq.s32.totalorder %s24, 1
      %p42 = por %p40, %p41
      %p44 = scmp.ne.s32.totalorder %s29, %s43
      %p45 = scmp.eq.s32.totalorder %s24, 0
      %p46 = por %p44, %p45
      %s47 = ssub.s32 %s18, %s25
      %p48 = scmp.eq.s32.totalorder %s47, 0
      %s50 = sadd.s32 %s49, 1
      %s51 = scalar_select %p48, %s49, %s50
      %p54 = pneg %p48
      %p55 = scmp.eq.s32.totalorder %s18, 1
      %p56 = por %p54, %p55
      %p57 = scmp.ne.s32.totalorder %s49, %s52
      %p58 = scmp.eq.s32.totalorder %s18, 0
      %p59 = por %p57, %p58
      %p60 = scmp.ne.s32.totalorder %s49, %s52
      %p61 = scmp.eq.s32.totalorder %s23, 1
      %p62 = por %p60, %p61
      %p63 = scmp.ne.s32.totalorder %s52, %s53
      %p64 = scmp.eq.s32.totalorder %s23, 0
      %p65 = por %p63, %p64
      %p66 = scmp.ne.s32.totalorder %s52, %s53
      %p67 = scmp.eq.s32.totalorder %s24, 1
      %p68 = por %p66, %p67
      %p70 = scmp.ne.s32.totalorder %s53, %s69
      %p71 = scmp.eq.s32.totalorder %s24, 0
      %p72 = por %p70, %p71
      %s73 = ssub.s32 %s18, %s25
      %p74 = scmp.eq.s32.totalorder %s73, 0
      %s76 = sadd.s32 %s75, 1
      %s77 = scalar_select %p74, %s75, %s76
      %p80 = pneg %p74
      %p81 = scmp.eq.s32.totalorder %s18, 1
      %p82 = por %p80, %p81
      %p83 = scmp.ne.s32.totalorder %s75, %s78
      %p84 = scmp.eq.s32.totalorder %s18, 0
      %p85 = por %p83, %p84
      %p86 = scmp.ne.s32.totalorder %s75, %s78
      %p87 = scmp.eq.s32.totalorder %s23, 1
      %p88 = por %p86, %p87
      %p89 = scmp.ne.s32.totalorder %s78, %s79
      %p90 = scmp.eq.s32.totalorder %s23, 0
      %p91 = por %p89, %p90
      %p92 = scmp.ne.s32.totalorder %s78, %s79
      %p93 = scmp.eq.s32.totalorder %s24, 1
      %p94 = por %p92, %p93
      %p96 = scmp.ne.s32.totalorder %s79, %s95
      %p97 = scmp.eq.s32.totalorder %s24, 0
      %p98 = por %p96, %p97
      %s100 = sadd.s32 %s99, 1
      %p103 = scmp.eq.s32.totalorder %s18, 1
      %p104 = scmp.ne.s32.totalorder %s99, %s101
      %p105 = scmp.eq.s32.totalorder %s18, 0
      %p106 = por %p104, %p105
      %p107 = scmp.ne.s32.totalorder %s99, %s101
      %p108 = scmp.eq.s32.totalorder %s23, 1
      %p109 = por %p107, %p108
      %p110 = scmp.ne.s32.totalorder %s101, %s102
      %p111 = scmp.eq.s32.totalorder %s23, 0
      %p112 = por %p110, %p111
      %p113 = scmp.ne.s32.totalorder %s101, %s102
      %p114 = scmp.eq.s32.totalorder %s24, 1
      %p115 = por %p113, %p114
      %p117 = scmp.ne.s32.totalorder %s102, %s116
      %p118 = scmp.eq.s32.totalorder %s24, 0
      %p119 = por %p117, %p118
      %p120 = scmp.le.s32.totalorder 1, %s18
      %p121 = scmp.lt.s32.totalorder %s18, 3
      %p122 = pnand %p120, %p121
      %p123 = pneg %p122
      // Predicated region
      $region9: #{tpu_custom_call.1} parent=5 // pred_check
        _
      $region10: #{tpu_custom_call.1} parent=5 // pred_check_branch
        %125 = sbr.rel (%p122) target = $region12
      $region11: #{tpu_custom_call.1} parent=5 // pred_region
        %s126 = ssub.s32 %s18, 1
        // Predicated region
        $region13: #{tpu_custom_call.1} parent=11 // pred_check
          %p127 = pneg %p39
        $region14: #{tpu_custom_call.1} parent=11 // pred_check_branch
          %129 = sbr.rel (%p127) target = $region16
        $region15: #{tpu_custom_call.1} parent=11 // pred_region
          %s131 = ssub.s32 16, 16
          %132 = vsyncadd [#allocation6], %s131
          %135 = dma.hbm_to_smem %s0, 16, [#allocation3], [#allocation6]
        $region16: #{tpu_custom_call.1} parent=11 // pred_fallthru
          _
      $region12: #{tpu_custom_call.1} parent=5 // pred_fallthru
        _
      %p136 = scmp.lt.s32.totalorder %s18, 2
      // Predicated region
      $region17: #{tpu_custom_call.1} parent=5 // pred_check
        %p137 = pneg %p136
      $region18: #{tpu_custom_call.1} parent=5 // pred_check_branch
        %139 = sbr.rel (%p137) target = $region20
      $region19: #{tpu_custom_call.1} parent=5 // pred_region
        // Predicated region
        $region21: #{tpu_custom_call.1} parent=19 // pred_check
          %p140 = pneg %p59
        $region22: #{tpu_custom_call.1} parent=19 // pred_check_branch
          %142 = sbr.rel (%p140) target = $region24
        $region23: #{tpu_custom_call.1} parent=19 // pred_region
          #allocation12 [shape = 'u32[6]{0}', space=smem, size = 0x18, scoped, tag = 'DMA stride descriptor']
          %s143 = sand.u32 %s49, 1
          %s144 = scalar_lea.sflag [#allocation4], %s143
          %s145 = sand.u32 %s49, 1
          %s146 = smul.addr %s145, 256
          %s147 = scalar_lea.vmem [#allocation8], %s146
          %s148 = smul.u32 16, %s18
          %s150 = ssub.s32 4096, 4096
          %151 = vsyncadd %s144, %s150
          %s152 = smul.addr %s148, 128
          %s153 = scalar_lea.hbm %s1, %s152
          %s155 = sshll.u32 1, 14
          %s156 = sxor.u32 4294967295, %s155
          %s158 = sld [smem:[#allocation0]]
          %s159 = sadd.s32 2, %s158
          %s161 = sshll.u32 7, 26
          %s162 = sxor.u32 4294967295, %s161
          %s163 = sand.u32 0, %s162
          %s164 = sshll.u32 %s159, 26
          %s165 = sor.u32 %s163, %s164
          %s166 = sshll.u32 %s147, 4
          %s167 = int_to_ptr.vmem [resolvable:$true] %s166
          %173 = sst [smem:[#allocation12]] 4096
          %s174 = scalar_lea.smem [#allocation12], 1
          %175 = sst [smem:[%s174]] 2048
          %s176 = scalar_lea.smem [#allocation12], 2
          %177 = sst [smem:[%s176]] 16
          %s178 = scalar_lea.smem [#allocation12], 3
          %179 = sst [smem:[%s178]] 128
          %s180 = scalar_lea.smem [#allocation12], 4
          %181 = sst [smem:[%s180]] 128
          %s182 = scalar_lea.smem [#allocation12], 5
          %183 = sst [smem:[%s182]] 8
          %185 = dma.general %s153, 4096, %s167, %s144, [#allocation11], [#allocation12], %s165, 0
        $region24: #{tpu_custom_call.1} parent=19 // pred_fallthru
          _
      $region20: #{tpu_custom_call.1} parent=5 // pred_fallthru
        _
      %p186 = scmp.le.s32.totalorder 1, %s18
      %p187 = scmp.lt.s32.totalorder %s18, 3
      %p188 = pnand %p186, %p187
      %p189 = pneg %p188
      // Predicated region
      $region25: #{tpu_custom_call.1} parent=5 // pred_check
        _
      $region26: #{tpu_custom_call.1} parent=5 // pred_check_branch
        %191 = sbr.rel (%p188) target = $region28
      $region27: #{tpu_custom_call.1} parent=5 // pred_region
        %s192 = ssub.s32 %s18, 1
        // Predicated region
        $region29: #{tpu_custom_call.1} parent=27 // pred_check
          %p193 = pneg %p39
        $region30: #{tpu_custom_call.1} parent=27 // pred_check_branch
          %195 = sbr.rel (%p193) target = $region32
        $region31: #{tpu_custom_call.1} parent=27 // pred_region
          %196 = dma.done [#allocation6], 16
        $region32: #{tpu_custom_call.1} parent=27 // pred_fallthru
          _
        %s197 = sand.u32 %s52, 1
        %s198 = scalar_lea.sflag [#allocation4], %s197
        %s199 = sand.u32 %s52, 1
        %s200 = smul.addr %s199, 256
        %s201 = scalar_lea.vmem [#allocation8], %s200
        // Predicated region
        $region33: #{tpu_custom_call.1} parent=27 // pred_check
          %p202 = pneg %p65
        $region34: #{tpu_custom_call.1} parent=27 // pred_check_branch
          %204 = sbr.rel (%p202) target = $region36
        $region35: #{tpu_custom_call.1} parent=27 // pred_region
          %205 = dma.done %s198, 4096
        $region36: #{tpu_custom_call.1} parent=27 // pred_fallthru
          _
        %206 = sfence
        %p207 = pneg %p39
        %p208 = pneg %p36
        %s209 = sand.u32 %s52, 1
        %s210 = scalar_lea.sflag [#allocation4], %s209
        %s211 = sand.u32 %s52, 1
        %s212 = smul.addr %s211, 256
        %s213 = scalar_lea.vmem [#allocation8], %s212
        %p214 = pneg %p65
        %p215 = pneg %p62
        %p216 = pneg %p91
        %p217 = pneg %p88
        %s218 = sand.u32 %s78, 1
        %s219 = scalar_lea.sflag [#allocation5], %s218
        %s220 = sand.u32 %s78, 1
        %s221 = smul.addr %s220, 128
        %s222 = scalar_lea.vmem [#allocation9], %s221
        %p223 = pneg %p112
        %p224 = pneg %p109
        %s225 = smul.u32 16, %s23
        %s226 = smul.u32 16, %s23
        %s227 = sld [smem:[#allocation3]]
        %s228 = sld [smem:[#allocation3 + $0x1]]
        %s229 = sld [smem:[#allocation3 + $0x2]]
        %s230 = sld [smem:[#allocation3 + $0x3]]
        %v231 = vld [vmem:[%s201] sm:$0xff]
        %v232 = vld [vmem:[%s201 + $0x8] sm:$0xff]
        %v233 = vld [vmem:[%s201 + $0x10] sm:$0xff]
        %v234 = vld [vmem:[%s201 + $0x18] sm:$0xff]
        %v235 = vld [vmem:[%s201 + $0x20] sm:$0xff]
        %v236 = vld [vmem:[%s201 + $0x28] sm:$0xff]
        %v237 = vld [vmem:[%s201 + $0x30] sm:$0xff]
        %v238 = vld [vmem:[%s201 + $0x38] sm:$0xff]
        %v239 = vld [vmem:[%s201 + $0x40] sm:$0xff]
        %v240 = vld [vmem:[%s201 + $0x48] sm:$0xff]
        %v241 = vld [vmem:[%s201 + $0x50] sm:$0xff]
        %v242 = vld [vmem:[%s201 + $0x58] sm:$0xff]
        %v243 = vld [vmem:[%s201 + $0x60] sm:$0xff]
        %v244 = vld [vmem:[%s201 + $0x68] sm:$0xff]
        %v245 = vld [vmem:[%s201 + $0x70] sm:$0xff]
        %v246 = vld [vmem:[%s201 + $0x78] sm:$0xff]
        %s247 = scalar_lea.vmem %s201, 128 [#allocation8]
        %v248 = vld [vmem:[%s247] sm:$0xff]
        %v249 = vld [vmem:[%s247 + $0x8] sm:$0xff]
        %v250 = vld [vmem:[%s247 + $0x10] sm:$0xff]
        %v251 = vld [vmem:[%s247 + $0x18] sm:$0xff]
        %v252 = vld [vmem:[%s247 + $0x20] sm:$0xff]
        %v253 = vld [vmem:[%s247 + $0x28] sm:$0xff]
        %v254 = vld [vmem:[%s247 + $0x30] sm:$0xff]
        %v255 = vld [vmem:[%s247 + $0x38] sm:$0xff]
        %v256 = vld [vmem:[%s247 + $0x40] sm:$0xff]
        %v257 = vld [vmem:[%s247 + $0x48] sm:$0xff]
        %v258 = vld [vmem:[%s247 + $0x50] sm:$0xff]
        %v259 = vld [vmem:[%s247 + $0x58] sm:$0xff]
        %v260 = vld [vmem:[%s247 + $0x60] sm:$0xff]
        %v261 = vld [vmem:[%s247 + $0x68] sm:$0xff]
        %v262 = vld [vmem:[%s247 + $0x70] sm:$0xff]
        %v263 = vld [vmem:[%s247 + $0x78] sm:$0xff]
        %v264 = vstv %s227
        %v265 = vmul.f32 %v264, %v231
        %v266 = vmul.f32 %v264, %v232
        %v267 = vmul.f32 %v264, %v233
        %v268 = vmul.f32 %v264, %v234
        %v269 = vmul.f32 %v264, %v235
        %v270 = vmul.f32 %v264, %v236
        %v271 = vmul.f32 %v264, %v237
        %v272 = vmul.f32 %v264, %v238
        %v273 = vmul.f32 %v264, %v239
        %v274 = vmul.f32 %v264, %v240
        %v275 = vmul.f32 %v264, %v241
        %v276 = vmul.f32 %v264, %v242
        %v277 = vmul.f32 %v264, %v243
        %v278 = vmul.f32 %v264, %v244
        %v279 = vmul.f32 %v264, %v245
        %v280 = vmul.f32 %v264, %v246
        %v281 = vstv %s228
        %v282 = vmul.f32 %v281, %v248
        %v283 = vmul.f32 %v281, %v249
        %v284 = vmul.f32 %v281, %v250
        %v285 = vmul.f32 %v281, %v251
        %v286 = vmul.f32 %v281, %v252
        %v287 = vmul.f32 %v281, %v253
        %v288 = vmul.f32 %v281, %v254
        %v289 = vmul.f32 %v281, %v255
        %v290 = vmul.f32 %v281, %v256
        %v291 = vmul.f32 %v281, %v257
        %v292 = vmul.f32 %v281, %v258
        %v293 = vmul.f32 %v281, %v259
        %v294 = vmul.f32 %v281, %v260
        %v295 = vmul.f32 %v281, %v261
        %v296 = vmul.f32 %v281, %v262
        %v297 = vmul.f32 %v281, %v263
        %v298 = vadd.f32 %v265, %v282
        %v299 = vadd.f32 %v266, %v283
        %v300 = vadd.f32 %v267, %v284
        %v301 = vadd.f32 %v268, %v285
        %v302 = vadd.f32 %v269, %v286
        %v303 = vadd.f32 %v270, %v287
        %v304 = vadd.f32 %v271, %v288
        %v305 = vadd.f32 %v272, %v289
        %v306 = vadd.f32 %v273, %v290
        %v307 = vadd.f32 %v274, %v291
        %v308 = vadd.f32 %v275, %v292
        %v309 = vadd.f32 %v276, %v293
        %v310 = vadd.f32 %v277, %v294
        %v311 = vadd.f32 %v278, %v295
        %v312 = vadd.f32 %v279, %v296
        %v313 = vadd.f32 %v280, %v297
        %s314 = sadd.f32 %s229, %s230
        %v315 = vstv %s314
        %v316 = vadd.f32 %v298, %v315
        %v317 = vadd.f32 %v299, %v315
        %v318 = vadd.f32 %v300, %v315
        %v319 = vadd.f32 %v301, %v315
        %v320 = vadd.f32 %v302, %v315
        %v321 = vadd.f32 %v303, %v315
        %v322 = vadd.f32 %v304, %v315
        %v323 = vadd.f32 %v305, %v315
        %v324 = vadd.f32 %v306, %v315
        %v325 = vadd.f32 %v307, %v315
        %v326 = vadd.f32 %v308, %v315
        %v327 = vadd.f32 %v309, %v315
        %v328 = vadd.f32 %v310, %v315
        %v329 = vadd.f32 %v311, %v315
        %v330 = vadd.f32 %v312, %v315
        %v331 = vadd.f32 %v313, %v315
        %332 = vst [vmem:[%s222] sm:$0xff] %v316
        %333 = vst [vmem:[%s222 + $0x8] sm:$0xff] %v317
        %334 = vst [vmem:[%s222 + $0x10] sm:$0xff] %v318
        %335 = vst [vmem:[%s222 + $0x18] sm:$0xff] %v319
        %336 = vst [vmem:[%s222 + $0x20] sm:$0xff] %v320
        %337 = vst [vmem:[%s222 + $0x28] sm:$0xff] %v321
        %338 = vst [vmem:[%s222 + $0x30] sm:$0xff] %v322
        %339 = vst [vmem:[%s222 + $0x38] sm:$0xff] %v323
        %340 = vst [vmem:[%s222 + $0x40] sm:$0xff] %v324
        %341 = vst [vmem:[%s222 + $0x48] sm:$0xff] %v325
        %342 = vst [vmem:[%s222 + $0x50] sm:$0xff] %v326
        %343 = vst [vmem:[%s222 + $0x58] sm:$0xff] %v327
        %344 = vst [vmem:[%s222 + $0x60] sm:$0xff] %v328
        %345 = vst [vmem:[%s222 + $0x68] sm:$0xff] %v329
        %346 = vst [vmem:[%s222 + $0x70] sm:$0xff] %v330
        %347 = vst [vmem:[%s222 + $0x78] sm:$0xff] %v331
        %p348 = scmp.eq.s32.totalorder %s23, 0
        // Predicated region
        $region37: #{tpu_custom_call.1} parent=27 // pred_check
          %p349 = pneg %p348
        $region38: #{tpu_custom_call.1} parent=27 // pred_check_branch
          %351 = sbr.rel (%p349) target = $region40
        $region39: #{tpu_custom_call.1} parent=27 // pred_region
          %s352 = scalar_lea.smem [#allocation2], 0
          %353 = sst [smem:[%s352]] 0.0
          %s354 = scalar_lea.smem [#allocation2], 1
          %355 = sst [smem:[%s354]] 0.0
        $region40: #{tpu_custom_call.1} parent=27 // pred_fallthru
          _
        %s356 = sld [smem:[#allocation2]]
        %v357 = vadd.f32 %v231, %v232
        %v358 = vadd.f32 %v357, %v233
        %v359 = vadd.f32 %v358, %v234
        %v360 = vadd.f32 %v359, %v235
        %v361 = vadd.f32 %v360, %v236
        %v362 = vadd.f32 %v361, %v237
        %v363 = vadd.f32 %v362, %v238
        %v364 = vadd.f32 %v363, %v239
        %v365 = vadd.f32 %v364, %v240
        %v366 = vadd.f32 %v365, %v241
        %v367 = vadd.f32 %v366, %v242
        %v368 = vadd.f32 %v367, %v243
        %v369 = vadd.f32 %v368, %v244
        %v370 = vadd.f32 %v369, %v245
        %v371 = vadd.f32 %v370, %v246
        %372 = vadd.xlane.f32.xlu0 %v371
        %v373 = vpop.xlane.xlu0 %372
        %v374 = vrot.slane %v373, 4
        %v375 = vadd.f32 %v373, %v374
        %v376 = vrot.slane %v375, 2
        %v377 = vadd.f32 %v375, %v376
        %v378 = vrot.slane %v377, 1
        %v379 = vadd.f32 %v377, %v378
        %s380 = vtos %v379
        %s381 = sadd.f32 %s356, %s380
        %s382 = scalar_lea.smem [#allocation2], 0
        %383 = sst [smem:[%s382]] %s381
        %s384 = sld [smem:[#allocation2 + $0x1]]
        %v385 = vadd.f32 %v248, %v249
        %v386 = vadd.f32 %v385, %v250
        %v387 = vadd.f32 %v386, %v251
        %v388 = vadd.f32 %v387, %v252
        %v389 = vadd.f32 %v388, %v253
        %v390 = vadd.f32 %v389, %v254
        %v391 = vadd.f32 %v390, %v255
        %v392 = vadd.f32 %v391, %v256
        %v393 = vadd.f32 %v392, %v257
        %v394 = vadd.f32 %v393, %v258
        %v395 = vadd.f32 %v394, %v259
        %v396 = vadd.f32 %v395, %v260
        %v397 = vadd.f32 %v396, %v261
        %v398 = vadd.f32 %v397, %v262
        %v399 = vadd.f32 %v398, %v263
        %400 = vadd.xlane.f32.xlu0 %v399
        %v401 = vpop.xlane.xlu0 %400
        %v402 = vrot.slane %v401, 4
        %v403 = vadd.f32 %v401, %v402
        %v404 = vrot.slane %v403, 2
        %v405 = vadd.f32 %v403, %v404
        %v406 = vrot.slane %v405, 1
        %v407 = vadd.f32 %v405, %v406
        %s408 = vtos %v407
        %s409 = sadd.f32 %s384, %s408
        %s410 = scalar_lea.smem [#allocation2], 1
        %411 = sst [smem:[%s410]] %s409
        %p412 = scmp.eq.s32.totalorder %s23, 1
        // Predicated region
        $region41: #{tpu_custom_call.1} parent=27 // pred_check
          %p413 = pneg %p412
        $region42: #{tpu_custom_call.1} parent=27 // pred_check_branch
          %415 = sbr.rel (%p413) target = $region44
        $region43: #{tpu_custom_call.1} parent=27 // pred_region
          %s416 = sld [smem:[#allocation2]]
          %s417 = smul.f32 %s416, 3.0517578e-05
          %s418 = smul.f32 %s227, %s417
          %s419 = sadd.f32 %s418, %s229
          %s420 = scalar_lea.smem [#allocation10], 0
          %421 = sst [smem:[%s420]] %s419
          %s422 = sld [smem:[#allocation2 + $0x1]]
          %s423 = smul.f32 %s422, 3.0517578e-05
          %s424 = smul.f32 %s228, %s423
          %s425 = sadd.f32 %s424, %s230
          %s426 = scalar_lea.smem [#allocation10], 1
          %427 = sst [smem:[%s426]] %s425
        $region44: #{tpu_custom_call.1} parent=27 // pred_fallthru
          _
        %s428 = sand.u32 %s78, 1
        %s429 = scalar_lea.sflag [#allocation5], %s428
        %s430 = sand.u32 %s78, 1
        %s431 = smul.addr %s430, 128
        %s432 = scalar_lea.vmem [#allocation9], %s431
        // Predicated region
        $region45: #{tpu_custom_call.1} parent=27 // pred_check
          %p433 = pneg %p88
        $region46: #{tpu_custom_call.1} parent=27 // pred_check_branch
          %435 = sbr.rel (%p433) target = $region48
        $region47: #{tpu_custom_call.1} parent=27 // pred_region
          %s436 = smul.u32 16, %s23
          %s438 = ssub.s32 2048, 2048
          %439 = vsyncadd %s429, %s438
          %s440 = smul.addr %s436, 128
          %s441 = scalar_lea.hbm %s2, %s440
          %s442 = sshll.u32 %s432, 4
          %s443 = int_to_ptr.vmem [resolvable:$true] %s442
          %448 = dma.vmem_to_hbm [thread:$0]  %s443, 2048, %s441, %s429, 128, 128, 8
        $region48: #{tpu_custom_call.1} parent=27 // pred_fallthru
          _
        // Predicated region
        $region49: #{tpu_custom_call.1} parent=27 // pred_check
          %p449 = pneg %p109
        $region50: #{tpu_custom_call.1} parent=27 // pred_check_branch
          %451 = sbr.rel (%p449) target = $region52
        $region51: #{tpu_custom_call.1} parent=27 // pred_region
          %s453 = ssub.s32 16, 16
          %454 = vsyncadd [#allocation7], %s453
          %457 = dma.smem_to_hbm [#allocation10], 16, %s3, [#allocation7]
        $region52: #{tpu_custom_call.1} parent=27 // pred_fallthru
          _
        // Predicated region
        $region53: #{tpu_custom_call.1} parent=27 // pred_check
          %p458 = pneg %p109
        $region54: #{tpu_custom_call.1} parent=27 // pred_check_branch
          %460 = sbr.rel (%p458) target = $region56
        $region55: #{tpu_custom_call.1} parent=27 // pred_region
          %461 = dma.done [#allocation7], 16
        $region56: #{tpu_custom_call.1} parent=27 // pred_fallthru
          _
        %462 = sfence
      $region28: #{tpu_custom_call.1} parent=5 // pred_fallthru
        _
      %p463 = scmp.le.s32.totalorder 2, %s18
      // Predicated region
      $region57: #{tpu_custom_call.1} parent=5 // pred_check
        %p464 = pneg %p463
      $region58: #{tpu_custom_call.1} parent=5 // pred_check_branch
        %466 = sbr.rel (%p464) target = $region60
      $region59: #{tpu_custom_call.1} parent=5 // pred_region
        %s467 = ssub.s32 %s18, 2
        // Predicated region
        $region61: #{tpu_custom_call.1} parent=59 // pred_check
          %p468 = pneg %p94
        $region62: #{tpu_custom_call.1} parent=59 // pred_check_branch
          %470 = sbr.rel (%p468) target = $region64
        $region63: #{tpu_custom_call.1} parent=59 // pred_region
          %s471 = sand.u32 %s79, 1
          %s472 = scalar_lea.sflag [#allocation5], %s471
          %s473 = sand.u32 %s79, 1
          %s474 = smul.addr %s473, 128
          %s475 = scalar_lea.vmem [#allocation9], %s474
          %476 = dma.done %s472, 2048
        $region64: #{tpu_custom_call.1} parent=59 // pred_fallthru
          _
      $region60: #{tpu_custom_call.1} parent=5 // pred_fallthru
        _
    $region6: #{tpu_custom_call.1} parent=1 // loop_footer
      %s22 = sadd.s32 1, %s18
    $region7: #{tpu_custom_call.1} parent=1 // loop_footer_branch
      %17 = sbr.rel target = $region3
    $region8: #{tpu_custom_call.1} parent=1 // loop_exit
      _
    %477 = vsyncpa [#allocation4], 1
    %s478 = scalar_lea.sflag [#allocation4], 1
    %479 = vsyncpa %s478, 1
    %480 = vsyncpa [#allocation5], 1
    %s481 = scalar_lea.sflag [#allocation5], 1
    %482 = vsyncpa %s481, 1
    %483 = vsyncpa [#allocation6], 1
    %s484 = scalar_lea.sflag [#allocation6], 1
    %485 = vsyncpa %s484, 1
    %486 = vsyncpa [#allocation7], 1
    %s487 = scalar_lea.sflag [#allocation7], 1
    %488 = vsyncpa %s487, 1

</llo_original>
